<compile_context>
chip_gen: v7x
topology: tpu7x:2x2x1
jax: 0.10.0
libtpu: 0.0.40
codegen_flags: <defaults>
</compile_context>

<pallas_src>
import jax
import jax.numpy as jnp
from jax.experimental import pallas as pl
from jax.experimental.pallas import tpu as pltpu

EPS = 1e-5
NEG_SLOPE = 0.01


# ----------------------------------------------------------------------------
# Small helpers
# ----------------------------------------------------------------------------
def _round_up(a, b):
    return (a + b - 1) // b * b


def _vmem_capacity_bytes():
    try:
        return int(pltpu.get_tpu_info().vmem_capacity_bytes)
    except Exception:
        return 64 * 1024 * 1024            # conservative (v7x per-TC VMEM)


def _choose_tile(hw, n, c_in, f_int, in_itemsize, budget_bytes):
    """Largest multiple-of-128 spatial tile fitting the per-step VMEM budget."""
    hw128 = _round_up(hw, 128)
    per_col = n * (2 * c_in * in_itemsize      # double-buffered g/x input blocks
                   + 2 * 4                      # double-buffered psi block (f32)
                   + (c_in + f_int + 4) * 4)    # live f32 temporaries / out block
    t = (budget_bytes // max(per_col, 1)) // 128 * 128
    return int(max(128, min(t, hw128, 32768)))


def _full_spec(shape):
    nd = len(shape)
    return pl.BlockSpec(tuple(shape), lambda t, nd=nd: (0,) * nd)


# ----------------------------------------------------------------------------
# In-kernel helpers
# ----------------------------------------------------------------------------
def _conv1x1(h, w, b):
    """1x1 conv as VPU broadcast-FMAs.

    h: (N, Cin, T) f32, w: (Cin, Cout, 1), b: (Cout, 1) -> (N, Cout, T).
    """
    acc = w[0] * h[:, 0:1, :]                 # (Cout,1)*(N,1,T) -> (N,Cout,T)
    for c in range(1, w.shape[0]):
        acc = acc + w[c] * h[:, c:c + 1, :]
    return acc + b


def _colsum(h):
    """Sum over batch (axis 0) and lanes (axis 2); (N,C,T) -> (C,1)."""
    return jnp.sum(jnp.sum(h, axis=2, keepdims=True), axis=0)


# ----------------------------------------------------------------------------
# Fused single-call kernel (whole problem resident in VMEM)
# ----------------------------------------------------------------------------
def _fused_kernel(g_ref, x_ref, wg_ref, bg_ref, wx_ref, bx_ref, wp_ref, bp_ref,
                  gng_ref, bng_ref, gnx_ref, bnx_ref, gnp_ref, bnp_ref, out_ref):
    g = g_ref[...].astype(jnp.float32)
    x = x_ref[...].astype(jnp.float32)

    def bn(h, gamma, beta):
        # Two-pass (shifted) mean/var: safe against cancellation.
        m = h.shape[0] * h.shape[2]
        mu = jnp.sum(jnp.sum(h, axis=2, keepdims=True), axis=0,
                     keepdims=True) * (1.0 / m)
        d = h - mu
        var = jnp.sum(jnp.sum(d * d, axis=2, keepdims=True), axis=0,
                      keepdims=True) * (1.0 / m)
        return gamma[None] * d * jax.lax.rsqrt(var + EPS) + beta[None]

    g1 = bn(_conv1x1(g, wg_ref[...], bg_ref[...]), gng_ref[...], bng_ref[...])
    x1 = bn(_conv1x1(x, wx_ref[...], bx_ref[...]), gnx_ref[...], bnx_ref[...])
    a = g1 + x1
    a = jnp.where(a >= 0, a, NEG_SLOPE * a)                   # LeakyReLU(0.01)
    p = jnp.sum(a * wp_ref[...][None], axis=1, keepdims=True) + bp_ref[...]
    psi = jax.nn.sigmoid(bn(p, gnp_ref[...], bnp_ref[...]))   # (N,1,HW)
    out_ref[...] = (x * psi).astype(out_ref.dtype)


# ----------------------------------------------------------------------------
# Tiled pass A: per-tile partial sum / sumsq of the branch conv outputs
# (output indexed by tile -> "parallel" grid; reduced in the wrapper)
# ----------------------------------------------------------------------------
def _stats_kernel(g_ref, x_ref, wg_ref, bg_ref, wx_ref, bx_ref, stat_ref):
    g1 = _conv1x1(g_ref[...].astype(jnp.float32), wg_ref[...], bg_ref[...])
    x1 = _conv1x1(x_ref[...].astype(jnp.float32), wx_ref[...], bx_ref[...])
    stat_ref[0, 0] = _colsum(g1)
    stat_ref[0, 1] = _colsum(g1 * g1)
    stat_ref[0, 2] = _colsum(x1)
    stat_ref[0, 3] = _colsum(x1 * x1)


# ----------------------------------------------------------------------------
# Tiled pass B: fused (folded-BN) branch convs + LeakyReLU + psi 1x1 conv;
# psi pre-activation stored sublane-dense (N, T); per-tile partial psi stats.
# ----------------------------------------------------------------------------
def _psi_kernel(g_ref, x_ref, wg_ref, wx_ref, b_ref, wp_ref, bp_ref,
                p_ref, pstat_ref):
    g = g_ref[...].astype(jnp.float32)
    x = x_ref[...].astype(jnp.float32)
    wg = wg_ref[...]
    wx = wx_ref[...]
    # Single accumulator for both branches (BN already folded, combined bias).
    acc = wg[0] * g[:, 0:1, :]
    for c in range(1, wg.shape[0]):
        acc = acc + wg[c] * g[:, c:c + 1, :]
    for c in range(wx.shape[0]):
        acc = acc + wx[c] * x[:, c:c + 1, :]
    a = acc + b_ref[...]
    a = jnp.where(a >= 0, a, NEG_SLOPE * a)                   # LeakyReLU(0.01)
    # psi 1x1 conv to one channel (contract over the f_int sublane axis).
    p = jnp.sum(a * wp_ref[...][None], axis=1) + bp_ref[...]  # (N, T)
    p_ref[...] = p
    pstat_ref[0, 0] = jnp.sum(jnp.sum(p, axis=1, keepdims=True),
                              axis=0, keepdims=True)
    pstat_ref[0, 1] = jnp.sum(jnp.sum(p * p, axis=1, keepdims=True),
                              axis=0, keepdims=True)


# ----------------------------------------------------------------------------
# Tiled pass C: psi BN (SMEM scalars) + sigmoid + gate
# ----------------------------------------------------------------------------
def _gate_kernel(x_ref, p_ref, sc_ref, out_ref):
    psi = jax.nn.sigmoid(p_ref[...] * sc_ref[0] + sc_ref[1])  # (N, T)
    out_ref[...] = (x_ref[...].astype(jnp.float32)
                    * psi[:, None, :]).astype(out_ref.dtype)


# ----------------------------------------------------------------------------
# Wrapper
# ----------------------------------------------------------------------------
def attention_block(g, x, params, *, force_tiled=False, tile_override=None):
    """g: (N, f_g, H, W); x: (N, f_l, H, W) -> (N, f_l, H, W). NCHW throughout."""
    N, Cg, H, W = g.shape
    _, Cl, _, _ = x.shape
    HW = H * W
    f_int = params['bg'].shape[0]

    g3 = g.reshape(N, Cg, HW)              # pure reshapes, no transposes
    x3 = x.reshape(N, Cl, HW)

    vmem_cap = _vmem_capacity_bytes()
    vmem_limit = int(min(vmem_cap * 3 // 4, 100 * 1024 * 1024))

    # -------- fused single-call fast path (VMEM-resident working set) --------
    fused_bytes = 4 * N * HW * (Cg + Cl + 3 * f_int + 2 + 2 * Cl)
    if (not force_tiled) and fused_bytes <= vmem_limit // 2:
        out3 = pl.pallas_call(
            _fused_kernel,
            out_shape=jax.ShapeDtypeStruct((N, Cl, HW), x.dtype),
            compiler_params=pltpu.CompilerParams(vmem_limit_bytes=vmem_limit),
        )(g3, x3, params['wg'], params['bg'], params['wx'], params['bx'],
          params['wp'], params['bp'], params['gng'], params['bng'],
          params['gnx'], params['bnx'], params['gnp'], params['bnp'])
        return out3.reshape(N, Cl, H, W)

    # -------- tiled 3-pass path (large inputs) --------------------------------
    in_item = max(jnp.dtype(g.dtype).itemsize, jnp.dtype(x.dtype).itemsize)
    if tile_override is not None:
        T = int(tile_override)
    else:
        T = _choose_tile(HW, N, Cg + Cl, f_int, in_item, vmem_limit // 3)
    HW_pad = _round_up(HW, T)
    pad = HW_pad - HW
    if pad:
        g3 = jnp.pad(g3, ((0, 0), (0, 0), (0, pad)))
        x3 = jnp.pad(x3, ((0, 0), (0, 0), (0, pad)))
    nt = HW_pad // T
    n_valid = float(N * HW)
    n_pad = float(N * pad)

    cp = pltpu.CompilerParams(dimension_semantics=("parallel",),
                              vmem_limit_bytes=vmem_limit)

    # ---- pass A: branch-conv batch statistics (per-tile partials) -----------
    stat = pl.pallas_call(
        _stats_kernel,
        out_shape=jax.ShapeDtypeStruct((nt, 4, f_int, 1), jnp.float32),
        grid=(nt,),
        in_specs=[
            pl.BlockSpec((N, Cg, T), lambda t: (0, 0, t)),
            pl.BlockSpec((N, Cl, T), lambda t: (0, 0, t)),
            _full_spec(params['wg'].shape),
            _full_spec(params['bg'].shape),
            _full_spec(params['wx'].shape),
            _full_spec(params['bx'].shape),
        ],
        out_specs=pl.BlockSpec((1, 4, f_int, 1), lambda t: (t, 0, 0, 0)),
        compiler_params=cp,
    )(g3, x3, params['wg'], params['bg'], params['wx'], params['bx'])
    stot = jnp.sum(stat, axis=0)                               # (4, f_int, 1)

    # Padded columns are all-zero inputs -> conv output there is exactly the
    # bias; subtract that closed-form contribution from the raw sums.
    bg = params['bg']
    bx = params['bx']
    sum_g = stot[0] - n_pad * bg
    ssq_g = stot[1] - n_pad * bg * bg
    sum_x = stot[2] - n_pad * bx
    ssq_x = stot[3] - n_pad * bx * bx

    # Fold BN (training-mode batch stats, biased variance) into the 1x1 convs.
    mean_g = sum_g / n_valid
    var_g = jnp.maximum(ssq_g / n_valid - mean_g * mean_g, 0.0)
    mean_x = sum_x / n_valid
    var_x = jnp.maximum(ssq_x / n_valid - mean_x * mean_x, 0.0)

    scale_g = params['gng'] * jax.lax.rsqrt(var_g + EPS)       # (f_int,1)
    shift_g = params['bng'] - scale_g * mean_g
    scale_x = params['gnx'] * jax.lax.rsqrt(var_x + EPS)
    shift_x = params['bnx'] - scale_x * mean_x

    wg_f = params['wg'] * scale_g[None]                        # (Cg,f_int,1)
    wx_f = params['wx'] * scale_x[None]                        # (Cl,f_int,1)
    b_comb = (bg * scale_g + shift_g) + (bx * scale_x + shift_x)   # (f_int,1)

    # ---- pass B: psi pre-activation + per-tile psi statistics ---------------
    psi_pre, pstat = pl.pallas_call(
        _psi_kernel,
        out_shape=(jax.ShapeDtypeStruct((N, HW_pad), jnp.float32),
                   jax.ShapeDtypeStruct((nt, 2, 1, 1), jnp.float32)),
        grid=(nt,),
        in_specs=[
            pl.BlockSpec((N, Cg, T), lambda t: (0, 0, t)),
            pl.BlockSpec((N, Cl, T), lambda t: (0, 0, t)),
            _full_spec(wg_f.shape), _full_spec(wx_f.shape),
            _full_spec(b_comb.shape),
            _full_spec(params['wp'].shape), _full_spec(params['bp'].shape),
        ],
        out_specs=(pl.BlockSpec((N, T), lambda t: (0, t)),
                   pl.BlockSpec((1, 2, 1, 1), lambda t: (t, 0, 0, 0))),
        compiler_params=cp,
    )(g3, x3, wg_f, wx_f, b_comb, params['wp'], params['bp'])

    # Padded-column psi pre-activation is the constant below; correct stats.
    a_pad = jnp.where(b_comb >= 0, b_comb, NEG_SLOPE * b_comb)     # (f_int,1)
    p_pad = jnp.sum(a_pad * params['wp']) + params['bp'][0, 0]     # scalar
    ptot = jnp.sum(pstat, axis=0)                                  # (2,1,1)
    sum_p = ptot[0, 0, 0] - n_pad * p_pad
    ssq_p = ptot[1, 0, 0] - n_pad * p_pad * p_pad

    mean_p = sum_p / n_valid
    var_p = jnp.maximum(ssq_p / n_valid - mean_p * mean_p, 0.0)
    scale_p = params['gnp'][0, 0] * jax.lax.rsqrt(var_p + EPS)
    shift_p = params['bnp'][0, 0] - scale_p * mean_p
    sc_sh = jnp.stack([scale_p, shift_p]).astype(jnp.float32)      # (2,) SMEM

    # ---- pass C: psi BN + sigmoid + gate (parallel over tiles) --------------
    out3 = pl.pallas_call(
        _gate_kernel,
        out_shape=jax.ShapeDtypeStruct((N, Cl, HW_pad), x.dtype),
        grid=(nt,),
        in_specs=[
            pl.BlockSpec((N, Cl, T), lambda t: (0, 0, t)),
            pl.BlockSpec((N, T), lambda t: (0, t)),
            pl.BlockSpec(memory_space=pltpu.MemorySpace.SMEM),
        ],
        out_specs=pl.BlockSpec((N, Cl, T), lambda t: (0, 0, t)),
        compiler_params=cp,
    )(x3, psi_pre, sc_sh)

    return out3[:, :, :HW].reshape(N, Cl, H, W)


# ----------------------------------------------------------------------------
# Params / reference / self-test
# ----------------------------------------------------------------------------
def init_params(key, f_int, f_g, f_l):
    ks = jax.random.split(key, 10)
    return {
        # conv weights stored as (C_in, C_out, 1): w[c] broadcasts as (C_out,1)
        'wg': jax.random.normal(ks[0], (f_g, f_int, 1), jnp.float32) * 0.2,
        'bg': jax.random.normal(ks[1], (f_int, 1), jnp.float32) * 0.1,
        'wx': jax.random.normal(ks[2], (f_l, f_int, 1), jnp.float32) * 0.2,
        'bx': jax.random.normal(ks[3], (f_int, 1), jnp.float32) * 0.1,
        'wp': jax.random.normal(ks[4], (f_int, 1), jnp.float32) * 0.2,
        'bp': jax.random.normal(ks[5], (1, 1), jnp.float32) * 0.1,
        # BatchNorm affine params (randomized to exercise the BN folding)
        'gng': 1.0 + 0.1 * jax.random.normal(ks[6], (f_int, 1), jnp.float32),
        'bng': 0.1 * jax.random.normal(ks[7], (f_int, 1), jnp.float32),
        'gnx': 1.0 + 0.1 * jax.random.normal(ks[8], (f_int, 1), jnp.float32),
        'bnx': 0.1 * jax.random.normal(ks[9], (f_int, 1), jnp.float32),
        'gnp': jnp.ones((1, 1), jnp.float32),
        'bnp': jnp.zeros((1, 1), jnp.float32),
    }


def _reference(g, x, p):
    """Pure-JAX reference matching the PyTorch forward pass."""
    N, Cg, H, W = g.shape
    Cl = x.shape[1]
    g3 = g.reshape(N, Cg, H * W).astype(jnp.float32)
    x3 = x.reshape(N, Cl, H * W).astype(jnp.float32)

    def bn(h, gamma, beta):
        mu = jnp.mean(h, axis=(0, 2), keepdims=True)
        var = jnp.mean((h - mu) ** 2, axis=(0, 2), keepdims=True)
        return gamma[None] * (h - mu) * jax.lax.rsqrt(var + EPS) + beta[None]

    def conv(h, w, b):
        return jnp.einsum('co,ncm->nom', w[:, :, 0], h) + b[None]

    g1 = bn(conv(g3, p['wg'], p['bg']), p['gng'], p['bng'])
    x1 = bn(conv(x3, p['wx'], p['bx']), p['gnx'], p['bnx'])
    a = g1 + x1
    a = jnp.where(a >= 0, a, NEG_SLOPE * a)
    pp = jnp.sum(a * p['wp'][None], axis=1, keepdims=True) + p['bp'][None]
    pp = jax.nn.sigmoid(bn(pp, p['gnp'], p['bnp']))
    return (x3 * pp).reshape(N, Cl, H, W).astype(x.dtype)


if __name__ == "__main__":
    # spatial_dims=2, f_int=8, f_g=4, f_l=4
    N, H, W = 2, 16, 16
    f_g, f_l, f_int = 4, 4, 8

    key = jax.random.PRNGKey(0)
    kg, kx, kp = jax.random.split(key, 3)
    g = jax.random.normal(kg, (N, f_g, H, W), jnp.float32)
    x = jax.random.normal(kx, (N, f_l, H, W), jnp.float32)
    params = init_params(kp, f_int, f_g, f_l)

    ref = jax.block_until_ready(_reference(g, x, params))

    # 1) Fused single-call fast path (the typical, VMEM-resident case).
    fn = jax.jit(attention_block)
    out = jax.block_until_ready(fn(g, x, params))
    assert out.shape == x.shape and out.dtype == x.dtype
    err = float(jnp.max(jnp.abs(out - ref)))
    assert jnp.allclose(out, ref, atol=1e-4, rtol=1e-4), f"fused mismatch: {err}"

    # 2) Tiled 3-pass path (forced), 2 tiles of 128 -> partial-stat reduction.
    fn_tiled = jax.jit(attention_block,
                       static_argnames=("force_tiled", "tile_override"))
    out_t = jax.block_until_ready(
        fn_tiled(g, x, params, force_tiled=True, tile_override=128))
    err_t = float(jnp.max(jnp.abs(out_t - ref)))
    assert jnp.allclose(out_t, ref, atol=1e-4, rtol=1e-4), f"tiled mismatch: {err_t}"

    # 3) Tiled path with H*W not a multiple of 128 -> padding + stat correction.
    H2, W2 = 10, 10
    g2 = jax.random.normal(kg, (N, f_g, H2, W2), jnp.float32)
    x2 = jax.random.normal(kx, (N, f_l, H2, W2), jnp.float32)
    ref2 = jax.block_until_ready(_reference(g2, x2, params))
    out2 = jax.block_until_ready(
        fn_tiled(g2, x2, params, force_tiled=True, tile_override=128))
    err2 = float(jnp.max(jnp.abs(out2 - ref2)))
    assert jnp.allclose(out2, ref2, atol=1e-4, rtol=1e-4), f"pad mismatch: {err2}"

    print("KERNEL_OK")
</pallas_src>

<mosaic_0001>
module attributes {stable_mosaic.version = 11 : i64} {
  func.func @_fused_kernel(%arg0: memref<2x4x256xf32, #tpu.memory_space<vmem>>, %arg1: memref<2x4x256xf32, #tpu.memory_space<vmem>>, %arg2: memref<4x8x1xf32, #tpu.memory_space<vmem>>, %arg3: memref<8x1xf32, #tpu.memory_space<vmem>>, %arg4: memref<4x8x1xf32, #tpu.memory_space<vmem>>, %arg5: memref<8x1xf32, #tpu.memory_space<vmem>>, %arg6: memref<8x1xf32, #tpu.memory_space<vmem>>, %arg7: memref<1x1xf32, #tpu.memory_space<vmem>>, %arg8: memref<8x1xf32, #tpu.memory_space<vmem>>, %arg9: memref<8x1xf32, #tpu.memory_space<vmem>>, %arg10: memref<8x1xf32, #tpu.memory_space<vmem>>, %arg11: memref<8x1xf32, #tpu.memory_space<vmem>>, %arg12: memref<1x1xf32, #tpu.memory_space<vmem>>, %arg13: memref<1x1xf32, #tpu.memory_space<vmem>>, %arg14: memref<2x4x256xf32, #tpu.memory_space<vmem>>) attributes {dimension_semantics = [], scalar_prefetch = 0 : i64, scratch_operands = 0 : i64, tpu.core_type = #tpu.core_type<tc>} {
    %c0 = arith.constant 0 : index
    %c0_0 = arith.constant 0 : index
    %c0_1 = arith.constant 0 : index
    %0 = vector.load %arg0[%c0, %c0_0, %c0_1] : memref<2x4x256xf32, #tpu.memory_space<vmem>>, vector<2x4x256xf32>
    %c0_2 = arith.constant 0 : index
    %c0_3 = arith.constant 0 : index
    %c0_4 = arith.constant 0 : index
    %1 = vector.load %arg1[%c0_2, %c0_3, %c0_4] : memref<2x4x256xf32, #tpu.memory_space<vmem>>, vector<2x4x256xf32>
    %c0_5 = arith.constant 0 : index
    %c0_6 = arith.constant 0 : index
    %c0_7 = arith.constant 0 : index
    %2 = vector.load %arg2[%c0_5, %c0_6, %c0_7] : memref<4x8x1xf32, #tpu.memory_space<vmem>>, vector<4x8x1xf32>
    %c0_8 = arith.constant 0 : index
    %c0_9 = arith.constant 0 : index
    %3 = vector.load %arg3[%c0_8, %c0_9] : memref<8x1xf32, #tpu.memory_space<vmem>>, vector<8x1xf32>
    %4 = vector.extract_strided_slice %2 {offsets = [0, 0, 0], sizes = [1, 8, 1], strides = [1, 1, 1]} : vector<4x8x1xf32> to vector<1x8x1xf32>
    %5 = vector.shape_cast %4 : vector<1x8x1xf32> to vector<8x1xf32>
    %6 = vector.extract_strided_slice %0 {offsets = [0, 0, 0], sizes = [2, 1, 256], strides = [1, 1, 1]} : vector<2x4x256xf32> to vector<2x1x256xf32>
    %7 = vector.shape_cast %5 : vector<8x1xf32> to vector<1x8x1xf32>
    %8 = vector.broadcast %7 : vector<1x8x1xf32> to vector<2x8x256xf32>
    %9 = vector.broadcast %6 : vector<2x1x256xf32> to vector<2x8x256xf32>
    %10 = arith.mulf %8, %9 : vector<2x8x256xf32>
    %11 = vector.extract_strided_slice %2 {offsets = [1, 0, 0], sizes = [1, 8, 1], strides = [1, 1, 1]} : vector<4x8x1xf32> to vector<1x8x1xf32>
    %12 = vector.shape_cast %11 : vector<1x8x1xf32> to vector<8x1xf32>
    %13 = vector.extract_strided_slice %0 {offsets = [0, 1, 0], sizes = [2, 1, 256], strides = [1, 1, 1]} : vector<2x4x256xf32> to vector<2x1x256xf32>
    %14 = vector.shape_cast %12 : vector<8x1xf32> to vector<1x8x1xf32>
    %15 = vector.broadcast %14 : vector<1x8x1xf32> to vector<2x8x256xf32>
    %16 = vector.broadcast %13 : vector<2x1x256xf32> to vector<2x8x256xf32>
    %17 = arith.mulf %15, %16 : vector<2x8x256xf32>
    %18 = arith.addf %10, %17 : vector<2x8x256xf32>
    %19 = vector.extract_strided_slice %2 {offsets = [2, 0, 0], sizes = [1, 8, 1], strides = [1, 1, 1]} : vector<4x8x1xf32> to vector<1x8x1xf32>
    %20 = vector.shape_cast %19 : vector<1x8x1xf32> to vector<8x1xf32>
    %21 = vector.extract_strided_slice %0 {offsets = [0, 2, 0], sizes = [2, 1, 256], strides = [1, 1, 1]} : vector<2x4x256xf32> to vector<2x1x256xf32>
    %22 = vector.shape_cast %20 : vector<8x1xf32> to vector<1x8x1xf32>
    %23 = vector.broadcast %22 : vector<1x8x1xf32> to vector<2x8x256xf32>
    %24 = vector.broadcast %21 : vector<2x1x256xf32> to vector<2x8x256xf32>
    %25 = arith.mulf %23, %24 : vector<2x8x256xf32>
    %26 = arith.addf %18, %25 : vector<2x8x256xf32>
    %27 = vector.extract_strided_slice %2 {offsets = [3, 0, 0], sizes = [1, 8, 1], strides = [1, 1, 1]} : vector<4x8x1xf32> to vector<1x8x1xf32>
    %28 = vector.shape_cast %27 : vector<1x8x1xf32> to vector<8x1xf32>
    %29 = vector.extract_strided_slice %0 {offsets = [0, 3, 0], sizes = [2, 1, 256], strides = [1, 1, 1]} : vector<2x4x256xf32> to vector<2x1x256xf32>
    %30 = vector.shape_cast %28 : vector<8x1xf32> to vector<1x8x1xf32>
    %31 = vector.broadcast %30 : vector<1x8x1xf32> to vector<2x8x256xf32>
    %32 = vector.broadcast %29 : vector<2x1x256xf32> to vector<2x8x256xf32>
    %33 = arith.mulf %31, %32 : vector<2x8x256xf32>
    %34 = arith.addf %26, %33 : vector<2x8x256xf32>
    %35 = vector.shape_cast %3 : vector<8x1xf32> to vector<1x8x1xf32>
    %36 = vector.broadcast %35 : vector<1x8x1xf32> to vector<2x8x256xf32>
    %37 = arith.addf %34, %36 : vector<2x8x256xf32>
    %c0_10 = arith.constant 0 : index
    %c0_11 = arith.constant 0 : index
    %38 = vector.load %arg8[%c0_10, %c0_11] : memref<8x1xf32, #tpu.memory_space<vmem>>, vector<8x1xf32>
    %c0_12 = arith.constant 0 : index
    %c0_13 = arith.constant 0 : index
    %39 = vector.load %arg9[%c0_12, %c0_13] : memref<8x1xf32, #tpu.memory_space<vmem>>, vector<8x1xf32>
    %cst = arith.constant dense<0.000000e+00> : vector<2x8xf32>
    %40 = vector.multi_reduction <add>, %37, %cst [2] : vector<2x8x256xf32> to vector<2x8xf32>
    %41 = vector.shape_cast %40 : vector<2x8xf32> to vector<2x8x1xf32>
    %cst_14 = arith.constant dense<0.000000e+00> : vector<8x1xf32>
    %42 = vector.multi_reduction <add>, %41, %cst_14 [0] : vector<2x8x1xf32> to vector<8x1xf32>
    %43 = vector.shape_cast %42 : vector<8x1xf32> to vector<1x8x1xf32>
    %cst_15 = arith.constant 0.001953125 : f32
    %44 = vector.broadcast %cst_15 : f32 to vector<1x8x1xf32>
    %45 = arith.mulf %43, %44 : vector<1x8x1xf32>
    %46 = vector.broadcast %45 : vector<1x8x1xf32> to vector<2x8x256xf32>
    %47 = arith.subf %37, %46 : vector<2x8x256xf32>
    %48 = arith.mulf %47, %47 : vector<2x8x256xf32>
    %cst_16 = arith.constant dense<0.000000e+00> : vector<2x8xf32>
    %49 = vector.multi_reduction <add>, %48, %cst_16 [2] : vector<2x8x256xf32> to vector<2x8xf32>
    %50 = vector.shape_cast %49 : vector<2x8xf32> to vector<2x8x1xf32>
    %cst_17 = arith.constant dense<0.000000e+00> : vector<8x1xf32>
    %51 = vector.multi_reduction <add>, %50, %cst_17 [0] : vector<2x8x1xf32> to vector<8x1xf32>
    %52 = vector.shape_cast %51 : vector<8x1xf32> to vector<1x8x1xf32>
    %cst_18 = arith.constant 0.001953125 : f32
    %53 = vector.broadcast %cst_18 : f32 to vector<1x8x1xf32>
    %54 = arith.mulf %52, %53 : vector<1x8x1xf32>
    %55 = vector.shape_cast %38 : vector<8x1xf32> to vector<1x8x1xf32>
    %56 = vector.broadcast %55 : vector<1x8x1xf32> to vector<2x8x256xf32>
    %57 = arith.mulf %56, %47 : vector<2x8x256xf32>
    %cst_19 = arith.constant 9.99999974E-6 : f32
    %58 = vector.broadcast %cst_19 : f32 to vector<1x8x1xf32>
    %59 = arith.addf %54, %58 : vector<1x8x1xf32>
    %60 = math.rsqrt %59 : vector<1x8x1xf32>
    %61 = vector.broadcast %60 : vector<1x8x1xf32> to vector<2x8x256xf32>
    %62 = arith.mulf %57, %61 : vector<2x8x256xf32>
    %63 = vector.shape_cast %39 : vector<8x1xf32> to vector<1x8x1xf32>
    %64 = vector.broadcast %63 : vector<1x8x1xf32> to vector<2x8x256xf32>
    %65 = arith.addf %62, %64 : vector<2x8x256xf32>
    %c0_20 = arith.constant 0 : index
    %c0_21 = arith.constant 0 : index
    %c0_22 = arith.constant 0 : index
    %66 = vector.load %arg4[%c0_20, %c0_21, %c0_22] : memref<4x8x1xf32, #tpu.memory_space<vmem>>, vector<4x8x1xf32>
    %c0_23 = arith.constant 0 : index
    %c0_24 = arith.constant 0 : index
    %67 = vector.load %arg5[%c0_23, %c0_24] : memref<8x1xf32, #tpu.memory_space<vmem>>, vector<8x1xf32>
    %68 = vector.extract_strided_slice %66 {offsets = [0, 0, 0], sizes = [1, 8, 1], strides = [1, 1, 1]} : vector<4x8x1xf32> to vector<1x8x1xf32>
    %69 = vector.shape_cast %68 : vector<1x8x1xf32> to vector<8x1xf32>
    %70 = vector.extract_strided_slice %1 {offsets = [0, 0, 0], sizes = [2, 1, 256], strides = [1, 1, 1]} : vector<2x4x256xf32> to vector<2x1x256xf32>
    %71 = vector.shape_cast %69 : vector<8x1xf32> to vector<1x8x1xf32>
    %72 = vector.broadcast %71 : vector<1x8x1xf32> to vector<2x8x256xf32>
    %73 = vector.broadcast %70 : vector<2x1x256xf32> to vector<2x8x256xf32>
    %74 = arith.mulf %72, %73 : vector<2x8x256xf32>
    %75 = vector.extract_strided_slice %66 {offsets = [1, 0, 0], sizes = [1, 8, 1], strides = [1, 1, 1]} : vector<4x8x1xf32> to vector<1x8x1xf32>
    %76 = vector.shape_cast %75 : vector<1x8x1xf32> to vector<8x1xf32>
    %77 = vector.extract_strided_slice %1 {offsets = [0, 1, 0], sizes = [2, 1, 256], strides = [1, 1, 1]} : vector<2x4x256xf32> to vector<2x1x256xf32>
    %78 = vector.shape_cast %76 : vector<8x1xf32> to vector<1x8x1xf32>
    %79 = vector.broadcast %78 : vector<1x8x1xf32> to vector<2x8x256xf32>
    %80 = vector.broadcast %77 : vector<2x1x256xf32> to vector<2x8x256xf32>
    %81 = arith.mulf %79, %80 : vector<2x8x256xf32>
    %82 = arith.addf %74, %81 : vector<2x8x256xf32>
    %83 = vector.extract_strided_slice %66 {offsets = [2, 0, 0], sizes = [1, 8, 1], strides = [1, 1, 1]} : vector<4x8x1xf32> to vector<1x8x1xf32>
    %84 = vector.shape_cast %83 : vector<1x8x1xf32> to vector<8x1xf32>
    %85 = vector.extract_strided_slice %1 {offsets = [0, 2, 0], sizes = [2, 1, 256], strides = [1, 1, 1]} : vector<2x4x256xf32> to vector<2x1x256xf32>
    %86 = vector.shape_cast %84 : vector<8x1xf32> to vector<1x8x1xf32>
    %87 = vector.broadcast %86 : vector<1x8x1xf32> to vector<2x8x256xf32>
    %88 = vector.broadcast %85 : vector<2x1x256xf32> to vector<2x8x256xf32>
    %89 = arith.mulf %87, %88 : vector<2x8x256xf32>
    %90 = arith.addf %82, %89 : vector<2x8x256xf32>
    %91 = vector.extract_strided_slice %66 {offsets = [3, 0, 0], sizes = [1, 8, 1], strides = [1, 1, 1]} : vector<4x8x1xf32> to vector<1x8x1xf32>
    %92 = vector.shape_cast %91 : vector<1x8x1xf32> to vector<8x1xf32>
    %93 = vector.extract_strided_slice %1 {offsets = [0, 3, 0], sizes = [2, 1, 256], strides = [1, 1, 1]} : vector<2x4x256xf32> to vector<2x1x256xf32>
    %94 = vector.shape_cast %92 : vector<8x1xf32> to vector<1x8x1xf32>
    %95 = vector.broadcast %94 : vector<1x8x1xf32> to vector<2x8x256xf32>
    %96 = vector.broadcast %93 : vector<2x1x256xf32> to vector<2x8x256xf32>
    %97 = arith.mulf %95, %96 : vector<2x8x256xf32>
    %98 = arith.addf %90, %97 : vector<2x8x256xf32>
    %99 = vector.shape_cast %67 : vector<8x1xf32> to vector<1x8x1xf32>
    %100 = vector.broadcast %99 : vector<1x8x1xf32> to vector<2x8x256xf32>
    %101 = arith.addf %98, %100 : vector<2x8x256xf32>
    %c0_25 = arith.constant 0 : index
    %c0_26 = arith.constant 0 : index
    %102 = vector.load %arg10[%c0_25, %c0_26] : memref<8x1xf32, #tpu.memory_space<vmem>>, vector<8x1xf32>
    %c0_27 = arith.constant 0 : index
    %c0_28 = arith.constant 0 : index
    %103 = vector.load %arg11[%c0_27, %c0_28] : memref<8x1xf32, #tpu.memory_space<vmem>>, vector<8x1xf32>
    %cst_29 = arith.constant dense<0.000000e+00> : vector<2x8xf32>
    %104 = vector.multi_reduction <add>, %101, %cst_29 [2] : vector<2x8x256xf32> to vector<2x8xf32>
    %105 = vector.shape_cast %104 : vector<2x8xf32> to vector<2x8x1xf32>
    %cst_30 = arith.constant dense<0.000000e+00> : vector<8x1xf32>
    %106 = vector.multi_reduction <add>, %105, %cst_30 [0] : vector<2x8x1xf32> to vector<8x1xf32>
    %107 = vector.shape_cast %106 : vector<8x1xf32> to vector<1x8x1xf32>
    %cst_31 = arith.constant 0.001953125 : f32
    %108 = vector.broadcast %cst_31 : f32 to vector<1x8x1xf32>
    %109 = arith.mulf %107, %108 : vector<1x8x1xf32>
    %110 = vector.broadcast %109 : vector<1x8x1xf32> to vector<2x8x256xf32>
    %111 = arith.subf %101, %110 : vector<2x8x256xf32>
    %112 = arith.mulf %111, %111 : vector<2x8x256xf32>
    %cst_32 = arith.constant dense<0.000000e+00> : vector<2x8xf32>
    %113 = vector.multi_reduction <add>, %112, %cst_32 [2] : vector<2x8x256xf32> to vector<2x8xf32>
    %114 = vector.shape_cast %113 : vector<2x8xf32> to vector<2x8x1xf32>
    %cst_33 = arith.constant dense<0.000000e+00> : vector<8x1xf32>
    %115 = vector.multi_reduction <add>, %114, %cst_33 [0] : vector<2x8x1xf32> to vector<8x1xf32>
    %116 = vector.shape_cast %115 : vector<8x1xf32> to vector<1x8x1xf32>
    %cst_34 = arith.constant 0.001953125 : f32
    %117 = vector.broadcast %cst_34 : f32 to vector<1x8x1xf32>
    %118 = arith.mulf %116, %117 : vector<1x8x1xf32>
    %119 = vector.shape_cast %102 : vector<8x1xf32> to vector<1x8x1xf32>
    %120 = vector.broadcast %119 : vector<1x8x1xf32> to vector<2x8x256xf32>
    %121 = arith.mulf %120, %111 : vector<2x8x256xf32>
    %cst_35 = arith.constant 9.99999974E-6 : f32
    %122 = vector.broadcast %cst_35 : f32 to vector<1x8x1xf32>
    %123 = arith.addf %118, %122 : vector<1x8x1xf32>
    %124 = math.rsqrt %123 : vector<1x8x1xf32>
    %125 = vector.broadcast %124 : vector<1x8x1xf32> to vector<2x8x256xf32>
    %126 = arith.mulf %121, %125 : vector<2x8x256xf32>
    %127 = vector.shape_cast %103 : vector<8x1xf32> to vector<1x8x1xf32>
    %128 = vector.broadcast %127 : vector<1x8x1xf32> to vector<2x8x256xf32>
    %129 = arith.addf %126, %128 : vector<2x8x256xf32>
    %130 = arith.addf %65, %129 : vector<2x8x256xf32>
    %cst_36 = arith.constant 0.000000e+00 : f32
    %131 = vector.broadcast %cst_36 : f32 to vector<2x8x256xf32>
    %132 = arith.cmpf oge, %130, %131 : vector<2x8x256xf32>
    %cst_37 = arith.constant 0.00999999977 : f32
    %133 = vector.broadcast %cst_37 : f32 to vector<2x8x256xf32>
    %134 = arith.mulf %133, %130 : vector<2x8x256xf32>
    %135 = arith.select %132, %130, %134 : vector<2x8x256xi1>, vector<2x8x256xf32>
    %c0_38 = arith.constant 0 : index
    %c0_39 = arith.constant 0 : index
    %136 = vector.load %arg6[%c0_38, %c0_39] : memref<8x1xf32, #tpu.memory_space<vmem>>, vector<8x1xf32>
    %137 = vector.shape_cast %136 : vector<8x1xf32> to vector<1x8x1xf32>
    %138 = vector.broadcast %137 : vector<1x8x1xf32> to vector<2x8x256xf32>
    %139 = arith.mulf %135, %138 : vector<2x8x256xf32>
    %cst_40 = arith.constant dense<0.000000e+00> : vector<2x256xf32>
    %140 = vector.multi_reduction <add>, %139, %cst_40 [1] : vector<2x8x256xf32> to vector<2x256xf32>
    %141 = vector.shape_cast %140 : vector<2x256xf32> to vector<2x1x256xf32>
    %c0_41 = arith.constant 0 : index
    %c0_42 = arith.constant 0 : index
    %142 = vector.load %arg7[%c0_41, %c0_42] : memref<1x1xf32, #tpu.memory_space<vmem>>, vector<1x1xf32>
    %143 = vector.shape_cast %142 : vector<1x1xf32> to vector<1x1x1xf32>
    %144 = vector.broadcast %143 : vector<1x1x1xf32> to vector<2x1x256xf32>
    %145 = arith.addf %141, %144 : vector<2x1x256xf32>
    %c0_43 = arith.constant 0 : index
    %c0_44 = arith.constant 0 : index
    %146 = vector.load %arg12[%c0_43, %c0_44] : memref<1x1xf32, #tpu.memory_space<vmem>>, vector<1x1xf32>
    %c0_45 = arith.constant 0 : index
    %c0_46 = arith.constant 0 : index
    %147 = vector.load %arg13[%c0_45, %c0_46] : memref<1x1xf32, #tpu.memory_space<vmem>>, vector<1x1xf32>
    %cst_47 = arith.constant dense<0.000000e+00> : vector<2x1xf32>
    %148 = vector.multi_reduction <add>, %145, %cst_47 [2] : vector<2x1x256xf32> to vector<2x1xf32>
    %149 = vector.shape_cast %148 : vector<2x1xf32> to vector<2x1x1xf32>
    %cst_48 = arith.constant dense<0.000000e+00> : vector<1x1xf32>
    %150 = vector.multi_reduction <add>, %149, %cst_48 [0] : vector<2x1x1xf32> to vector<1x1xf32>
    %151 = vector.shape_cast %150 : vector<1x1xf32> to vector<1x1x1xf32>
    %cst_49 = arith.constant 0.001953125 : f32
    %152 = vector.broadcast %cst_49 : f32 to vector<1x1x1xf32>
    %153 = arith.mulf %151, %152 : vector<1x1x1xf32>
    %154 = vector.broadcast %153 : vector<1x1x1xf32> to vector<2x1x256xf32>
    %155 = arith.subf %145, %154 : vector<2x1x256xf32>
    %156 = arith.mulf %155, %155 : vector<2x1x256xf32>
    %cst_50 = arith.constant dense<0.000000e+00> : vector<2x1xf32>
    %157 = vector.multi_reduction <add>, %156, %cst_50 [2] : vector<2x1x256xf32> to vector<2x1xf32>
    %158 = vector.shape_cast %157 : vector<2x1xf32> to vector<2x1x1xf32>
    %cst_51 = arith.constant dense<0.000000e+00> : vector<1x1xf32>
    %159 = vector.multi_reduction <add>, %158, %cst_51 [0] : vector<2x1x1xf32> to vector<1x1xf32>
    %160 = vector.shape_cast %159 : vector<1x1xf32> to vector<1x1x1xf32>
    %cst_52 = arith.constant 0.001953125 : f32
    %161 = vector.broadcast %cst_52 : f32 to vector<1x1x1xf32>
    %162 = arith.mulf %160, %161 : vector<1x1x1xf32>
    %163 = vector.shape_cast %146 : vector<1x1xf32> to vector<1x1x1xf32>
    %164 = vector.broadcast %163 : vector<1x1x1xf32> to vector<2x1x256xf32>
    %165 = arith.mulf %164, %155 : vector<2x1x256xf32>
    %cst_53 = arith.constant 9.99999974E-6 : f32
    %166 = vector.broadcast %cst_53 : f32 to vector<1x1x1xf32>
    %167 = arith.addf %162, %166 : vector<1x1x1xf32>
    %168 = math.rsqrt %167 : vector<1x1x1xf32>
    %169 = vector.broadcast %168 : vector<1x1x1xf32> to vector<2x1x256xf32>
    %170 = arith.mulf %165, %169 : vector<2x1x256xf32>
    %171 = vector.shape_cast %147 : vector<1x1xf32> to vector<1x1x1xf32>
    %172 = vector.broadcast %171 : vector<1x1x1xf32> to vector<2x1x256xf32>
    %173 = arith.addf %170, %172 : vector<2x1x256xf32>
    %174 = arith.negf %173 : vector<2x1x256xf32>
    %175 = math.exp %174 : vector<2x1x256xf32>
    %cst_54 = arith.constant 1.000000e+00 : f32
    %176 = vector.broadcast %cst_54 : f32 to vector<2x1x256xf32>
    %177 = arith.addf %176, %175 : vector<2x1x256xf32>
    %178 = arith.divf %176, %177 : vector<2x1x256xf32>
    %179 = vector.broadcast %178 : vector<2x1x256xf32> to vector<2x4x256xf32>
    %180 = arith.mulf %1, %179 : vector<2x4x256xf32>
    %c0_55 = arith.constant 0 : index
    %c0_56 = arith.constant 0 : index
    %c0_57 = arith.constant 0 : index
    %181 = vector.load %arg14[%c0_55, %c0_56, %c0_57] : memref<2x4x256xf32, #tpu.memory_space<vmem>>, vector<2x4x256xf32>
    tpu.vector_store %arg14[%c0_55, %c0_56, %c0_57], %180 {strides = array<i32>} : memref<2x4x256xf32, #tpu.memory_space<vmem>>, vector<2x4x256xf32>,
    return
  }
}

</mosaic_0001>

<llo_original>
// kernel: attention_block.1
$region0: #{attention_block.1}
  #allocation0 [shape = 'u32[]', space=smem, size = 0x4, offset = 0x4, fixed_abs, tag = 'smem constant byte address 0x4 - core index']
  #allocation1 [shape = 'u32[144,128]{1,0:T(1,128)}', space=vmem, size = 0x12000, scoped, tag = 'internal scratch']
  #allocation2 [shape = 'f32[1,1]{1,0:T(1,128)S(1)}', space=vmem, size = 0x200, scoped, tag = 'scoped memory for attention_block.1']
  #allocation3 [shape = 'f32[1,1]{1,0:T(1,128)S(1)}', space=vmem, size = 0x200, scoped, tag = 'scoped memory for attention_block.1']
  #allocation4 [shape = 'f32[1,1]{1,0:T(1,128)S(1)}', space=vmem, size = 0x200, scoped, tag = 'scoped memory for attention_block.1']
  %s0 = inlined_call_operand.vmem [shape: f32[2,4,256], index: 0, kind: input, shape index: {}]
  %s1 = inlined_call_operand.vmem [shape: f32[2,4,256], index: 1, kind: input, shape index: {}]
  %s2 = inlined_call_operand.vmem [shape: f32[4,8,1], index: 2, kind: input, shape index: {}]
  %s3 = inlined_call_operand.vmem [shape: f32[8,1], index: 3, kind: input, shape index: {}]
  %s4 = inlined_call_operand.vmem [shape: f32[4,8,1], index: 4, kind: input, shape index: {}]
  %s5 = inlined_call_operand.vmem [shape: f32[8,1], index: 5, kind: input, shape index: {}]
  %s6 = inlined_call_operand.vmem [shape: f32[8,1], index: 6, kind: input, shape index: {}]
  %s7 = inlined_call_operand.<no memory space> [shape: f32[1,1], index: 7, kind: input, shape index: {}]
  %s8 = inlined_call_operand.vmem [shape: f32[8,1], index: 8, kind: input, shape index: {}]
  %s9 = inlined_call_operand.vmem [shape: f32[8,1], index: 9, kind: input, shape index: {}]
  %s10 = inlined_call_operand.vmem [shape: f32[8,1], index: 10, kind: input, shape index: {}]
  %s11 = inlined_call_operand.vmem [shape: f32[8,1], index: 11, kind: input, shape index: {}]
  %s12 = inlined_call_operand.<no memory space> [shape: f32[1,1], index: 12, kind: input, shape index: {}]
  %s13 = inlined_call_operand.<no memory space> [shape: f32[1,1], index: 13, kind: input, shape index: {}]
  %s14 = inlined_call_operand.vmem [shape: f32[2,4,256], index: 14, kind: output, shape index: {}]
  %s15 = sld [smem:[#allocation0]]
  $region66: #{attention_block.1} parent=0
    _
  %s17 = ssub.s32 1, %s15
  %s18 = scalar_select 0, %s17, %s15
  %v19 = vstv %s7
  %20 = vst [vmem:[#allocation2] sm:$0x1] %v19
  %v21 = vstv %s12
  %22 = vst [vmem:[#allocation3] sm:$0x1] %v21
  %v23 = vstv %s13
  %24 = vst [vmem:[#allocation4] sm:$0x1] %v23
  // Predicated region
  $region2: #{attention_block.1} parent=0 // pred_check
    _
  $region3: #{attention_block.1} parent=0 // pred_check_branch
    %26 = sbr.rel (0) target = $region5
  $region4: #{attention_block.1} parent=0 // pred_region
    _
  $region5: #{attention_block.1} parent=0 // pred_fallthru
    _
  // Predicated region
  $region6: #{attention_block.1} parent=0 // pred_check
    _
  $region7: #{attention_block.1} parent=0 // pred_check_branch
    %28 = sbr.rel (0) target = $region9
  $region8: #{attention_block.1} parent=0 // pred_region
    _
  $region9: #{attention_block.1} parent=0 // pred_fallthru
    _
  // Predicated region
  $region10: #{attention_block.1} parent=0 // pred_check
    _
  $region11: #{attention_block.1} parent=0 // pred_check_branch
    %30 = sbr.rel (0) target = $region13
  $region12: #{attention_block.1} parent=0 // pred_region
    _
  $region13: #{attention_block.1} parent=0 // pred_fallthru
    _
  // Predicated region
  $region14: #{attention_block.1} parent=0 // pred_check
    _
  $region15: #{attention_block.1} parent=0 // pred_check_branch
    %32 = sbr.rel (0) target = $region17
  $region16: #{attention_block.1} parent=0 // pred_region
    _
  $region17: #{attention_block.1} parent=0 // pred_fallthru
    _
  // Predicated region
  $region18: #{attention_block.1} parent=0 // pred_check
    _
  $region19: #{attention_block.1} parent=0 // pred_check_branch
    %34 = sbr.rel (0) target = $region21
  $region20: #{attention_block.1} parent=0 // pred_region
    _
  $region21: #{attention_block.1} parent=0 // pred_fallthru
    _
  // Predicated region
  $region22: #{attention_block.1} parent=0 // pred_check
    _
  $region23: #{attention_block.1} parent=0 // pred_check_branch
    %36 = sbr.rel (0) target = $region25
  $region24: #{attention_block.1} parent=0 // pred_region
    _
  $region25: #{attention_block.1} parent=0 // pred_fallthru
    _
  // Predicated region
  $region26: #{attention_block.1} parent=0 // pred_check
    _
  $region27: #{attention_block.1} parent=0 // pred_check_branch
    %38 = sbr.rel (0) target = $region29
  $region28: #{attention_block.1} parent=0 // pred_region
    _
  $region29: #{attention_block.1} parent=0 // pred_fallthru
    _
  // Predicated region
  $region30: #{attention_block.1} parent=0 // pred_check
    _
  $region31: #{attention_block.1} parent=0 // pred_check_branch
    %40 = sbr.rel (0) target = $region33
  $region32: #{attention_block.1} parent=0 // pred_region
    _
  $region33: #{attention_block.1} parent=0 // pred_fallthru
    _
  // Predicated region
  $region34: #{attention_block.1} parent=0 // pred_check
    _
  $region35: #{attention_block.1} parent=0 // pred_check_branch
    %42 = sbr.rel (0) target = $region37
  $region36: #{attention_block.1} parent=0 // pred_region
    _
  $region37: #{attention_block.1} parent=0 // pred_fallthru
    _
  // Predicated region
  $region38: #{attention_block.1} parent=0 // pred_check
    _
  $region39: #{attention_block.1} parent=0 // pred_check_branch
    %44 = sbr.rel (0) target = $region41
  $region40: #{attention_block.1} parent=0 // pred_region
    _
  $region41: #{attention_block.1} parent=0 // pred_fallthru
    _
  // Predicated region
  $region42: #{attention_block.1} parent=0 // pred_check
    _
  $region43: #{attention_block.1} parent=0 // pred_check_branch
    %46 = sbr.rel (0) target = $region45
  $region44: #{attention_block.1} parent=0 // pred_region
    _
  $region45: #{attention_block.1} parent=0 // pred_fallthru
    _
  // Predicated region
  $region46: #{attention_block.1} parent=0 // pred_check
    _
  $region47: #{attention_block.1} parent=0 // pred_check_branch
    %48 = sbr.rel (0) target = $region49
  $region48: #{attention_block.1} parent=0 // pred_region
    _
  $region49: #{attention_block.1} parent=0 // pred_fallthru
    _
  // Predicated region
  $region50: #{attention_block.1} parent=0 // pred_check
    _
  $region51: #{attention_block.1} parent=0 // pred_check_branch
    %50 = sbr.rel (0) target = $region53
  $region52: #{attention_block.1} parent=0 // pred_region
    _
  $region53: #{attention_block.1} parent=0 // pred_fallthru
    _
  // Predicated region
  $region54: #{attention_block.1} parent=0 // pred_check
    _
  $region55: #{attention_block.1} parent=0 // pred_check_branch
    %52 = sbr.rel (0) target = $region57
  $region56: #{attention_block.1} parent=0 // pred_region
    _
  $region57: #{attention_block.1} parent=0 // pred_fallthru
    _
  %v53 = vld [vmem:[%s0] sm:$0xff]
  %v54 = vld [vmem:[%s0 + $0x8] sm:$0xff]
  %v55 = vld [vmem:[%s1] sm:$0xff]
  %v56 = vld [vmem:[%s1 + $0x8] sm:$0xff]
  %v57 = vld [vmem:[%s2] sm:$0xff]
  %v58 = vld [vmem:[%s2 + $0x8] sm:$0xff]
  %v59 = vld [vmem:[%s2 + $0x10] sm:$0xff]
  %v60 = vld [vmem:[%s2 + $0x18] sm:$0xff]
  %v61 = vld [vmem:[%s3] sm:$0xff]
  %63 = vset.pattern.permute.xlu0 0
  %64 = vperm.xlu0 %63, %v57
  %v65 = vpop.permute.xlu0 %64
  %v69 = vlaneseq
  %v70 = vshrl.u32 %v69, 7
  %v71 = vsub.s32 0, %v70
  %v72 = vrot.slane %v53, %v71
  %v73 = vlaneseq
  %v74 = vshrl.u32 %v73, 7
  %v75 = vsub.s32 4, %v74
  %v76 = vrot.slane %v53, %v75
  %v77 = vlaneseq
  %v78 = vshrl.u32 %v77, 7
  %v79 = vsub.s32 0, %v78
  %v80 = vrot.slane %v54, %v79
  %v81 = vlaneseq
  %v82 = vshrl.u32 %v81, 7
  %v83 = vsub.s32 4, %v82
  %v84 = vrot.slane %v54, %v83
  %v89 = vlaneseq
  %v90 = vshrl.u32 %v89, 7
  %v91 = vsub.s32 0, %v90
  %v92 = vrot.slane %v72, %v91
  %v93 = vlaneseq
  %v94 = vshrl.u32 %v93, 7
  %v95 = vsub.s32 0, %v94
  %v96 = vrot.slane %v76, %v95
  %v97 = vlaneseq
  %v98 = vshrl.u32 %v97, 7
  %v99 = vsub.s32 0, %v98
  %v100 = vrot.slane %v80, %v99
  %v101 = vlaneseq
  %v102 = vshrl.u32 %v101, 7
  %v103 = vsub.s32 0, %v102
  %v104 = vrot.slane %v84, %v103
  %v105 = vmul.f32 %v65, %v92
  %v106 = vmul.f32 %v65, %v96
  %v107 = vmul.f32 %v65, %v100
  %v108 = vmul.f32 %v65, %v104
  %110 = vset.pattern.permute.xlu0 0
  %111 = vperm.xlu0 %110, %v58
  %v112 = vpop.permute.xlu0 %111
  %v114 = vlaneseq
  %v115 = vshrl.u32 %v114, 7
  %v116 = vsub.s32 1, %v115
  %v117 = vrot.slane %v53, %v116
  %v118 = vlaneseq
  %v119 = vshrl.u32 %v118, 7
  %v120 = vsub.s32 5, %v119
  %v121 = vrot.slane %v53, %v120
  %v122 = vlaneseq
  %v123 = vshrl.u32 %v122, 7
  %v124 = vsub.s32 1, %v123
  %v125 = vrot.slane %v54, %v124
  %v126 = vlaneseq
  %v127 = vshrl.u32 %v126, 7
  %v128 = vsub.s32 5, %v127
  %v129 = vrot.slane %v54, %v128
  %v134 = vlaneseq
  %v135 = vshrl.u32 %v134, 7
  %v136 = vsub.s32 1, %v135
  %v137 = vrot.slane %v117, %v136
  %v138 = vlaneseq
  %v139 = vshrl.u32 %v138, 7
  %v140 = vsub.s32 1, %v139
  %v141 = vrot.slane %v121, %v140
  %v142 = vlaneseq
  %v143 = vshrl.u32 %v142, 7
  %v144 = vsub.s32 1, %v143
  %v145 = vrot.slane %v125, %v144
  %v146 = vlaneseq
  %v147 = vshrl.u32 %v146, 7
  %v148 = vsub.s32 1, %v147
  %v149 = vrot.slane %v129, %v148
  %v150 = vmul.f32 %v112, %v137
  %v151 = vmul.f32 %v112, %v141
  %v152 = vmul.f32 %v112, %v145
  %v153 = vmul.f32 %v112, %v149
  %v154 = vadd.f32 %v105, %v150
  %v155 = vadd.f32 %v106, %v151
  %v156 = vadd.f32 %v107, %v152
  %v157 = vadd.f32 %v108, %v153
  %159 = vset.pattern.permute.xlu0 0
  %160 = vperm.xlu0 %159, %v59
  %v161 = vpop.permute.xlu0 %160
  %v163 = vlaneseq
  %v164 = vshrl.u32 %v163, 7
  %v165 = vsub.s32 2, %v164
  %v166 = vrot.slane %v53, %v165
  %v167 = vlaneseq
  %v168 = vshrl.u32 %v167, 7
  %v169 = vsub.s32 6, %v168
  %v170 = vrot.slane %v53, %v169
  %v171 = vlaneseq
  %v172 = vshrl.u32 %v171, 7
  %v173 = vsub.s32 2, %v172
  %v174 = vrot.slane %v54, %v173
  %v175 = vlaneseq
  %v176 = vshrl.u32 %v175, 7
  %v177 = vsub.s32 6, %v176
  %v178 = vrot.slane %v54, %v177
  %v183 = vlaneseq
  %v184 = vshrl.u32 %v183, 7
  %v185 = vsub.s32 2, %v184
  %v186 = vrot.slane %v166, %v185
  %v187 = vlaneseq
  %v188 = vshrl.u32 %v187, 7
  %v189 = vsub.s32 2, %v188
  %v190 = vrot.slane %v170, %v189
  %v191 = vlaneseq
  %v192 = vshrl.u32 %v191, 7
  %v193 = vsub.s32 2, %v192
  %v194 = vrot.slane %v174, %v193
  %v195 = vlaneseq
  %v196 = vshrl.u32 %v195, 7
  %v197 = vsub.s32 2, %v196
  %v198 = vrot.slane %v178, %v197
  %v199 = vmul.f32 %v161, %v186
  %v200 = vmul.f32 %v161, %v190
  %v201 = vmul.f32 %v161, %v194
  %v202 = vmul.f32 %v161, %v198
  %v203 = vadd.f32 %v154, %v199
  %v204 = vadd.f32 %v155, %v200
  %v205 = vadd.f32 %v156, %v201
  %v206 = vadd.f32 %v157, %v202
  %208 = vset.pattern.permute.xlu0 0
  %209 = vperm.xlu0 %208, %v60
  %v210 = vpop.permute.xlu0 %209
  %v212 = vlaneseq
  %v213 = vshrl.u32 %v212, 7
  %v214 = vsub.s32 3, %v213
  %v215 = vrot.slane %v53, %v214
  %v216 = vlaneseq
  %v217 = vshrl.u32 %v216, 7
  %v218 = vsub.s32 7, %v217
  %v219 = vrot.slane %v53, %v218
  %v220 = vlaneseq
  %v221 = vshrl.u32 %v220, 7
  %v222 = vsub.s32 3, %v221
  %v223 = vrot.slane %v54, %v222
  %v224 = vlaneseq
  %v225 = vshrl.u32 %v224, 7
  %v226 = vsub.s32 7, %v225
  %v227 = vrot.slane %v54, %v226
  %v232 = vlaneseq
  %v233 = vshrl.u32 %v232, 7
  %v234 = vsub.s32 3, %v233
  %v235 = vrot.slane %v215, %v234
  %v236 = vlaneseq
  %v237 = vshrl.u32 %v236, 7
  %v238 = vsub.s32 3, %v237
  %v239 = vrot.slane %v219, %v238
  %v240 = vlaneseq
  %v241 = vshrl.u32 %v240, 7
  %v242 = vsub.s32 3, %v241
  %v243 = vrot.slane %v223, %v242
  %v244 = vlaneseq
  %v245 = vshrl.u32 %v244, 7
  %v246 = vsub.s32 3, %v245
  %v247 = vrot.slane %v227, %v246
  %v248 = vmul.f32 %v210, %v235
  %v249 = vmul.f32 %v210, %v239
  %v250 = vmul.f32 %v210, %v243
  %v251 = vmul.f32 %v210, %v247
  %v252 = vadd.f32 %v203, %v248
  %v253 = vadd.f32 %v204, %v249
  %v254 = vadd.f32 %v205, %v250
  %v255 = vadd.f32 %v206, %v251
  %257 = vset.pattern.permute.xlu0 0
  %258 = vperm.xlu0 %257, %v61
  %v259 = vpop.permute.xlu0 %258
  %v261 = vadd.f32 %v252, %v259
  %v262 = vadd.f32 %v253, %v259
  %v263 = vadd.f32 %v254, %v259
  %v264 = vadd.f32 %v255, %v259
  %v265 = vld [vmem:[%s8] sm:$0xff]
  %v266 = vld [vmem:[%s9] sm:$0xff]
  %v267 = vadd.f32 %v261, %v262
  %268 = vadd.xlane.f32.xlu0 %v267
  %v269 = vpop.xlane.xlu0 %268
  %v270 = vadd.f32 %v263, %v264
  %271 = vadd.xlane.f32.xlu0 %v270
  %v272 = vpop.xlane.xlu0 %271
  %v273 = vadd.f32 %v269, %v272
  %v274 = vmul.f32 %v273, 0.001953125
  %v275 = vsub.f32 %v261, %v274
  %v276 = vsub.f32 %v262, %v274
  %v277 = vsub.f32 %v263, %v274
  %v278 = vsub.f32 %v264, %v274
  %v279 = vmul.f32 %v275, %v275
  %v280 = vmul.f32 %v276, %v276
  %v281 = vmul.f32 %v277, %v277
  %v282 = vmul.f32 %v278, %v278
  %v283 = vadd.f32 %v279, %v280
  %284 = vadd.xlane.f32.xlu0 %v283
  %v285 = vpop.xlane.xlu0 %284
  %v286 = vadd.f32 %v281, %v282
  %287 = vadd.xlane.f32.xlu0 %v286
  %v288 = vpop.xlane.xlu0 %287
  %v289 = vadd.f32 %v285, %v288
  %v290 = vmul.f32 %v289, 0.001953125
  %292 = vset.pattern.permute.xlu0 0
  %293 = vperm.xlu0 %292, %v265
  %v294 = vpop.permute.xlu0 %293
  %v296 = vmul.f32 %v294, %v275
  %v297 = vmul.f32 %v294, %v276
  %v298 = vmul.f32 %v294, %v277
  %v299 = vmul.f32 %v294, %v278
  %v300 = vadd.f32 %v290, 1e-05
  %v301 = vrsqrt.pop %v300
  %v302 = vmul.f32 %v296, %v301
  %v303 = vmul.f32 %v297, %v301
  %v304 = vmul.f32 %v298, %v301
  %v305 = vmul.f32 %v299, %v301
  %307 = vset.pattern.permute.xlu0 0
  %308 = vperm.xlu0 %307, %v266
  %v309 = vpop.permute.xlu0 %308
  %v311 = vadd.f32 %v302, %v309
  %v312 = vadd.f32 %v303, %v309
  %v313 = vadd.f32 %v304, %v309
  %v314 = vadd.f32 %v305, %v309
  %v315 = vld [vmem:[%s4] sm:$0xff]
  %v316 = vld [vmem:[%s4 + $0x8] sm:$0xff]
  %v317 = vld [vmem:[%s4 + $0x10] sm:$0xff]
  %v318 = vld [vmem:[%s4 + $0x18] sm:$0xff]
  %v319 = vld [vmem:[%s5] sm:$0xff]
  %321 = vset.pattern.permute.xlu0 0
  %322 = vperm.xlu0 %321, %v315
  %v323 = vpop.permute.xlu0 %322
  %v327 = vlaneseq
  %v328 = vshrl.u32 %v327, 7
  %v329 = vsub.s32 0, %v328
  %v330 = vrot.slane %v55, %v329
  %v331 = vlaneseq
  %v332 = vshrl.u32 %v331, 7
  %v333 = vsub.s32 4, %v332
  %v334 = vrot.slane %v55, %v333
  %v335 = vlaneseq
  %v336 = vshrl.u32 %v335, 7
  %v337 = vsub.s32 0, %v336
  %v338 = vrot.slane %v56, %v337
  %v339 = vlaneseq
  %v340 = vshrl.u32 %v339, 7
  %v341 = vsub.s32 4, %v340
  %v342 = vrot.slane %v56, %v341
  %v347 = vlaneseq
  %v348 = vshrl.u32 %v347, 7
  %v349 = vsub.s32 0, %v348
  %v350 = vrot.slane %v330, %v349
  %v351 = vlaneseq
  %v352 = vshrl.u32 %v351, 7
  %v353 = vsub.s32 0, %v352
  %v354 = vrot.slane %v334, %v353
  %v355 = vlaneseq
  %v356 = vshrl.u32 %v355, 7
  %v357 = vsub.s32 0, %v356
  %v358 = vrot.slane %v338, %v357
  %v359 = vlaneseq
  %v360 = vshrl.u32 %v359, 7
  %v361 = vsub.s32 0, %v360
  %v362 = vrot.slane %v342, %v361
  %v363 = vmul.f32 %v323, %v350
  %v364 = vmul.f32 %v323, %v354
  %v365 = vmul.f32 %v323, %v358
  %v366 = vmul.f32 %v323, %v362
  %368 = vset.pattern.permute.xlu0 0
  %369 = vperm.xlu0 %368, %v316
  %v370 = vpop.permute.xlu0 %369
  %v372 = vlaneseq
  %v373 = vshrl.u32 %v372, 7
  %v374 = vsub.s32 1, %v373
  %v375 = vrot.slane %v55, %v374
  %v376 = vlaneseq
  %v377 = vshrl.u32 %v376, 7
  %v378 = vsub.s32 5, %v377
  %v379 = vrot.slane %v55, %v378
  %v380 = vlaneseq
  %v381 = vshrl.u32 %v380, 7
  %v382 = vsub.s32 1, %v381
  %v383 = vrot.slane %v56, %v382
  %v384 = vlaneseq
  %v385 = vshrl.u32 %v384, 7
  %v386 = vsub.s32 5, %v385
  %v387 = vrot.slane %v56, %v386
  %v392 = vlaneseq
  %v393 = vshrl.u32 %v392, 7
  %v394 = vsub.s32 1, %v393
  %v395 = vrot.slane %v375, %v394
  %v396 = vlaneseq
  %v397 = vshrl.u32 %v396, 7
  %v398 = vsub.s32 1, %v397
  %v399 = vrot.slane %v379, %v398
  %v400 = vlaneseq
  %v401 = vshrl.u32 %v400, 7
  %v402 = vsub.s32 1, %v401
  %v403 = vrot.slane %v383, %v402
  %v404 = vlaneseq
  %v405 = vshrl.u32 %v404, 7
  %v406 = vsub.s32 1, %v405
  %v407 = vrot.slane %v387, %v406
  %v408 = vmul.f32 %v370, %v395
  %v409 = vmul.f32 %v370, %v399
  %v410 = vmul.f32 %v370, %v403
  %v411 = vmul.f32 %v370, %v407
  %v412 = vadd.f32 %v363, %v408
  %v413 = vadd.f32 %v364, %v409
  %v414 = vadd.f32 %v365, %v410
  %v415 = vadd.f32 %v366, %v411
  %417 = vset.pattern.permute.xlu0 0
  %418 = vperm.xlu0 %417, %v317
  %v419 = vpop.permute.xlu0 %418
  %v421 = vlaneseq
  %v422 = vshrl.u32 %v421, 7
  %v423 = vsub.s32 2, %v422
  %v424 = vrot.slane %v55, %v423
  %v425 = vlaneseq
  %v426 = vshrl.u32 %v425, 7
  %v427 = vsub.s32 6, %v426
  %v428 = vrot.slane %v55, %v427
  %v429 = vlaneseq
  %v430 = vshrl.u32 %v429, 7
  %v431 = vsub.s32 2, %v430
  %v432 = vrot.slane %v56, %v431
  %v433 = vlaneseq
  %v434 = vshrl.u32 %v433, 7
  %v435 = vsub.s32 6, %v434
  %v436 = vrot.slane %v56, %v435
  %v441 = vlaneseq
  %v442 = vshrl.u32 %v441, 7
  %v443 = vsub.s32 2, %v442
  %v444 = vrot.slane %v424, %v443
  %v445 = vlaneseq
  %v446 = vshrl.u32 %v445, 7
  %v447 = vsub.s32 2, %v446
  %v448 = vrot.slane %v428, %v447
  %v449 = vlaneseq
  %v450 = vshrl.u32 %v449, 7
  %v451 = vsub.s32 2, %v450
  %v452 = vrot.slane %v432, %v451
  %v453 = vlaneseq
  %v454 = vshrl.u32 %v453, 7
  %v455 = vsub.s32 2, %v454
  %v456 = vrot.slane %v436, %v455
  %v457 = vmul.f32 %v419, %v444
  %v458 = vmul.f32 %v419, %v448
  %v459 = vmul.f32 %v419, %v452
  %v460 = vmul.f32 %v419, %v456
  %v461 = vadd.f32 %v412, %v457
  %v462 = vadd.f32 %v413, %v458
  %v463 = vadd.f32 %v414, %v459
  %v464 = vadd.f32 %v415, %v460
  %466 = vset.pattern.permute.xlu0 0
  %467 = vperm.xlu0 %466, %v318
  %v468 = vpop.permute.xlu0 %467
  %v470 = vlaneseq
  %v471 = vshrl.u32 %v470, 7
  %v472 = vsub.s32 3, %v471
  %v473 = vrot.slane %v55, %v472
  %v474 = vlaneseq
  %v475 = vshrl.u32 %v474, 7
  %v476 = vsub.s32 7, %v475
  %v477 = vrot.slane %v55, %v476
  %v478 = vlaneseq
  %v479 = vshrl.u32 %v478, 7
  %v480 = vsub.s32 3, %v479
  %v481 = vrot.slane %v56, %v480
  %v482 = vlaneseq
  %v483 = vshrl.u32 %v482, 7
  %v484 = vsub.s32 7, %v483
  %v485 = vrot.slane %v56, %v484
  %v490 = vlaneseq
  %v491 = vshrl.u32 %v490, 7
  %v492 = vsub.s32 3, %v491
  %v493 = vrot.slane %v473, %v492
  %v494 = vlaneseq
  %v495 = vshrl.u32 %v494, 7
  %v496 = vsub.s32 3, %v495
  %v497 = vrot.slane %v477, %v496
  %v498 = vlaneseq
  %v499 = vshrl.u32 %v498, 7
  %v500 = vsub.s32 3, %v499
  %v501 = vrot.slane %v481, %v500
  %v502 = vlaneseq
  %v503 = vshrl.u32 %v502, 7
  %v504 = vsub.s32 3, %v503
  %v505 = vrot.slane %v485, %v504
  %v506 = vmul.f32 %v468, %v493
  %v507 = vmul.f32 %v468, %v497
  %v508 = vmul.f32 %v468, %v501
  %v509 = vmul.f32 %v468, %v505
  %v510 = vadd.f32 %v461, %v506
  %v511 = vadd.f32 %v462, %v507
  %v512 = vadd.f32 %v463, %v508
  %v513 = vadd.f32 %v464, %v509
  %515 = vset.pattern.permute.xlu0 0
  %516 = vperm.xlu0 %515, %v319
  %v517 = vpop.permute.xlu0 %516
  %v519 = vadd.f32 %v510, %v517
  %v520 = vadd.f32 %v511, %v517
  %v521 = vadd.f32 %v512, %v517
  %v522 = vadd.f32 %v513, %v517
  %v523 = vld [vmem:[%s10] sm:$0xff]
  %v524 = vld [vmem:[%s11] sm:$0xff]
  %v525 = vadd.f32 %v519, %v520
  %526 = vadd.xlane.f32.xlu0 %v525
  %v527 = vpop.xlane.xlu0 %526
  %v528 = vadd.f32 %v521, %v522
  %529 = vadd.xlane.f32.xlu0 %v528
  %v530 = vpop.xlane.xlu0 %529
  %v531 = vadd.f32 %v527, %v530
  %v532 = vmul.f32 %v531, 0.001953125
  %v533 = vsub.f32 %v519, %v532
  %v534 = vsub.f32 %v520, %v532
  %v535 = vsub.f32 %v521, %v532
  %v536 = vsub.f32 %v522, %v532
  %v537 = vmul.f32 %v533, %v533
  %v538 = vmul.f32 %v534, %v534
  %v539 = vmul.f32 %v535, %v535
  %v540 = vmul.f32 %v536, %v536
  %v541 = vadd.f32 %v537, %v538
  %542 = vadd.xlane.f32.xlu0 %v541
  %v543 = vpop.xlane.xlu0 %542
  %v544 = vadd.f32 %v539, %v540
  %545 = vadd.xlane.f32.xlu0 %v544
  %v546 = vpop.xlane.xlu0 %545
  %v547 = vadd.f32 %v543, %v546
  %v548 = vmul.f32 %v547, 0.001953125
  %550 = vset.pattern.permute.xlu0 0
  %551 = vperm.xlu0 %550, %v523
  %v552 = vpop.permute.xlu0 %551
  %v554 = vmul.f32 %v552, %v533
  %v555 = vmul.f32 %v552, %v534
  %v556 = vmul.f32 %v552, %v535
  %v557 = vmul.f32 %v552, %v536
  %v558 = vadd.f32 %v548, 1e-05
  %v559 = vrsqrt.pop %v558
  %v560 = vmul.f32 %v554, %v559
  %v561 = vmul.f32 %v555, %v559
  %v562 = vmul.f32 %v556, %v559
  %v563 = vmul.f32 %v557, %v559
  %565 = vset.pattern.permute.xlu0 0
  %566 = vperm.xlu0 %565, %v524
  %v567 = vpop.permute.xlu0 %566
  %v569 = vadd.f32 %v560, %v567
  %v570 = vadd.f32 %v561, %v567
  %v571 = vadd.f32 %v562, %v567
  %v572 = vadd.f32 %v563, %v567
  %v573 = vadd.f32 %v311, %v569
  %v574 = vadd.f32 %v312, %v570
  %v575 = vadd.f32 %v313, %v571
  %v576 = vadd.f32 %v314, %v572
  %vm577 = vcmp.ge.f32.partialorder %v573, 0.0
  %vm578 = vcmp.ge.f32.partialorder %v574, 0.0
  %vm579 = vcmp.ge.f32.partialorder %v575, 0.0
  %vm580 = vcmp.ge.f32.partialorder %v576, 0.0
  %v581 = vmul.f32 %v573, 0.01
  %v582 = vmul.f32 %v574, 0.01
  %v583 = vmul.f32 %v575, 0.01
  %v584 = vmul.f32 %v576, 0.01
  %v585 = vsel %vm577, %v573, %v581
  %v586 = vsel %vm578, %v574, %v582
  %v587 = vsel %vm579, %v575, %v583
  %v588 = vsel %vm580, %v576, %v584
  %v589 = vld [vmem:[%s6] sm:$0xff]
  %591 = vset.pattern.permute.xlu0 0
  %592 = vperm.xlu0 %591, %v589
  %v593 = vpop.permute.xlu0 %592
  %v595 = vmul.f32 %v585, %v593
  %v596 = vmul.f32 %v586, %v593
  %v597 = vmul.f32 %v587, %v593
  %v598 = vmul.f32 %v588, %v593
  %v599 = vrot.slane %v595, 4
  %v600 = vadd.f32 %v595, %v599
  %v601 = vrot.slane %v600, 2
  %v602 = vadd.f32 %v600, %v601
  %v603 = vrot.slane %v602, 1
  %v604 = vadd.f32 %v602, %v603
  %v605 = vrot.slane %v596, 4
  %v606 = vadd.f32 %v596, %v605
  %v607 = vrot.slane %v606, 2
  %v608 = vadd.f32 %v606, %v607
  %v609 = vrot.slane %v608, 1
  %v610 = vadd.f32 %v608, %v609
  %v611 = vrot.slane %v597, 4
  %v612 = vadd.f32 %v597, %v611
  %v613 = vrot.slane %v612, 2
  %v614 = vadd.f32 %v612, %v613
  %v615 = vrot.slane %v614, 1
  %v616 = vadd.f32 %v614, %v615
  %v617 = vrot.slane %v598, 4
  %v618 = vadd.f32 %v598, %v617
  %v619 = vrot.slane %v618, 2
  %v620 = vadd.f32 %v618, %v619
  %v621 = vrot.slane %v620, 1
  %v622 = vadd.f32 %v620, %v621
  %v623 = vld [vmem:[#allocation2] sm:$0x1]
  %625 = vset.pattern.permute.xlu0 0
  %626 = vperm.xlu0 %625, %v623
  %v627 = vpop.permute.xlu0 %626
  %v629 = vlaneseq
  %v630 = vshrl.u32 %v629, 7
  %v631 = vsub.s32 0, %v630
  %v632 = vrot.slane %v627, %v631
  %v633 = vadd.f32 %v604, %v632
  %v634 = vadd.f32 %v610, %v632
  %v635 = vadd.f32 %v616, %v632
  %v636 = vadd.f32 %v622, %v632
  %v637 = vld [vmem:[#allocation3] sm:$0x1]
  %v638 = vld [vmem:[#allocation4] sm:$0x1]
  %v639 = vadd.f32 %v633, %v634
  %640 = vadd.xlane.f32.xlu0 %v639
  %v641 = vpop.xlane.xlu0 %640
  %v642 = vadd.f32 %v635, %v636
  %643 = vadd.xlane.f32.xlu0 %v642
  %v644 = vpop.xlane.xlu0 %643
  %v645 = vadd.f32 %v641, %v644
  %v646 = vmul.f32 %v645, 0.001953125
  %v647 = vsub.f32 %v633, %v646
  %v648 = vsub.f32 %v634, %v646
  %v649 = vsub.f32 %v635, %v646
  %v650 = vsub.f32 %v636, %v646
  %v651 = vmul.f32 %v647, %v647
  %v652 = vmul.f32 %v648, %v648
  %v653 = vmul.f32 %v649, %v649
  %v654 = vmul.f32 %v650, %v650
  %v655 = vadd.f32 %v651, %v652
  %656 = vadd.xlane.f32.xlu0 %v655
  %v657 = vpop.xlane.xlu0 %656
  %v658 = vadd.f32 %v653, %v654
  %659 = vadd.xlane.f32.xlu0 %v658
  %v660 = vpop.xlane.xlu0 %659
  %v661 = vadd.f32 %v657, %v660
  %v662 = vmul.f32 %v661, 0.001953125
  %664 = vset.pattern.permute.xlu0 0
  %665 = vperm.xlu0 %664, %v637
  %v666 = vpop.permute.xlu0 %665
  %v668 = vlaneseq
  %v669 = vshrl.u32 %v668, 7
  %v670 = vsub.s32 0, %v669
  %v671 = vrot.slane %v666, %v670
  %v672 = vmul.f32 %v671, %v647
  %v673 = vmul.f32 %v671, %v648
  %v674 = vmul.f32 %v671, %v649
  %v675 = vmul.f32 %v671, %v650
  %v676 = vadd.f32 %v662, 1e-05
  %v677 = vrsqrt.pop %v676
  %v678 = vmul.f32 %v672, %v677
  %v679 = vmul.f32 %v673, %v677
  %v680 = vmul.f32 %v674, %v677
  %v681 = vmul.f32 %v675, %v677
  %683 = vset.pattern.permute.xlu0 0
  %684 = vperm.xlu0 %683, %v638
  %v685 = vpop.permute.xlu0 %684
  %v687 = vlaneseq
  %v688 = vshrl.u32 %v687, 7
  %v689 = vsub.s32 0, %v688
  %v690 = vrot.slane %v685, %v689
  %v691 = vadd.f32 %v678, %v690
  %v692 = vadd.f32 %v679, %v690
  %v693 = vadd.f32 %v680, %v690
  %v694 = vadd.f32 %v681, %v690
  %v695 = vxor.u32 %v691, 2147483648
  %v696 = vxor.u32 %v692, 2147483648
  %v697 = vxor.u32 %v693, 2147483648
  %v698 = vxor.u32 %v694, 2147483648
  %v699 = vmul.f32 %v695, 1.442695
  %v700 = vpow.pop %v699
  %v701 = vmul.f32 %v696, 1.442695
  %v702 = vpow.pop %v701
  %v703 = vmul.f32 %v697, 1.442695
  %v704 = vpow.pop %v703
  %v705 = vmul.f32 %v698, 1.442695
  %v706 = vpow.pop %v705
  %v707 = vadd.f32 %v700, 1.0
  %v708 = vadd.f32 %v702, 1.0
  %v709 = vadd.f32 %v704, 1.0
  %v710 = vadd.f32 %v706, 1.0
  %v711 = vrcp.pop %v707
  %v712 = vmul.f32 1.0, %v711
  %v713 = vrcp.pop %v708
  %v714 = vmul.f32 1.0, %v713
  %v715 = vrcp.pop %v709
  %v716 = vmul.f32 1.0, %v715
  %v717 = vrcp.pop %v710
  %v718 = vmul.f32 1.0, %v717
  %v723 = vcombine.low %v712, %v714
  %v724 = vcombine.low %v716, %v718
  %v727 = vmul.f32 %v55, %v723
  %v728 = vmul.f32 %v56, %v724
  %729 = vst [vmem:[%s14] sm:$0xff] %v727
  %730 = vst [vmem:[%s14 + $0x8] sm:$0xff] %v728
  // Predicated region
  $region58: #{attention_block.1} parent=0 // pred_check
    _
  $region59: #{attention_block.1} parent=0 // pred_check_branch
    %732 = sbr.rel (0) target = $region61
  $region60: #{attention_block.1} parent=0 // pred_region
    _
  $region61: #{attention_block.1} parent=0 // pred_fallthru
    _
  // Predicated region
  $region62: #{attention_block.1} parent=0 // pred_check
    _
  $region63: #{attention_block.1} parent=0 // pred_check_branch
    %734 = sbr.rel (0) target = $region65
  $region64: #{attention_block.1} parent=0 // pred_region
    _
  $region65: #{attention_block.1} parent=0 // pred_fallthru
    _

</llo_original>
